<compile_context>
chip_gen: v6e
topology: v6e:2x2x1
jax: 0.10.0
libtpu: 0.0.40
codegen_flags: <defaults>
</compile_context>

<pallas_src>
import jax
import jax.numpy as jnp
from jax.experimental import pallas as pl
from jax.experimental.pallas import tpu as pltpu

LANES = 128


def _round_up(n, m):
    return ((n + m - 1) // m) * m


def mlp_kernel(params_ref, x_ref, o_ref):
    # x_ref: (3, tbr, 128) batch tile; params_ref: (11,) f32 in SMEM.
    x0 = x_ref[0]  # (tbr, 128) dense vreg tiles
    x1 = x_ref[1]
    x2 = x_ref[2]

    # Row-major packing: w1 (2,3), b1 (2,), w2 (1,2), b2 (1,).
    w1_00 = params_ref[0]
    w1_01 = params_ref[1]
    w1_02 = params_ref[2]
    w1_10 = params_ref[3]
    w1_11 = params_ref[4]
    w1_12 = params_ref[5]
    b1_0 = params_ref[6]
    b1_1 = params_ref[7]
    w2_0 = params_ref[8]
    w2_1 = params_ref[9]
    b2_0 = params_ref[10]

    # Hidden layer + ReLU, fully unrolled on the VPU.
    h0 = jnp.maximum(w1_00 * x0 + w1_01 * x1 + w1_02 * x2 + b1_0, 0.0)
    h1 = jnp.maximum(w1_10 * x0 + w1_11 * x1 + w1_12 * x2 + b1_1, 0.0)

    # Output layer: dense (tbr, 128) unmasked store (edge blocks masked by Pallas).
    o_ref[...] = (w2_0 * h0 + w2_1 * h1 + b2_0).astype(o_ref.dtype)


def mlp_forward(x, w1, b1, w2, b2, *, block_rows=1024):
    """x: (B, 3); w1: (2, 3); b1: (2,); w2: (1, 2); b2: (1,)  -> (B, 1).

    block_rows = number of 128-wide batch row-groups per grid step
    (1024 -> 131072 batch elements, ~2 MiB of block traffic per step).
    """
    B = x.shape[0]
    dtype = x.dtype

    # Pack all 11 parameters into one small SMEM-resident array.
    params = jnp.concatenate(
        [w1.reshape(-1), b1.reshape(-1), w2.reshape(-1), b2.reshape(-1)]
    ).astype(jnp.float32)

    # Feature-major, batch folded onto (sublane=rows, lane=128): (3, rows, 128).
    b_pad = _round_up(B, LANES)
    xt = x.T  # (3, B)
    if b_pad != B:
        # Only a <=127-column pad, done once.
        xt = jnp.pad(xt, ((0, 0), (0, b_pad - B)))
    rows = b_pad // LANES
    xt = xt.reshape(3, rows, LANES)

    # Block sizing: full extent for small batches (always layout-legal),
    # otherwise block_rows (multiple of 8) with a cdiv grid + masked edge block.
    if rows <= block_rows:
        tbr = rows
    else:
        tbr = block_rows
    grid = (pl.cdiv(rows, tbr),)

    out = pl.pallas_call(
        mlp_kernel,
        out_shape=jax.ShapeDtypeStruct((rows, LANES), dtype),
        grid=grid,
        in_specs=[
            pl.BlockSpec(memory_space=pltpu.MemorySpace.SMEM),   # packed params
            pl.BlockSpec((3, tbr, LANES), lambda i: (0, i, 0)),  # x tile
        ],
        out_specs=pl.BlockSpec((tbr, LANES), lambda i: (i, 0)),
        compiler_params=pltpu.CompilerParams(
            dimension_semantics=("parallel",),
        ),
    )(params, xt)

    # Back to PyTorch-style (B, 1): row-major (rows, 128) == flat padded batch.
    return out.reshape(b_pad)[:B].reshape(B, 1)


if __name__ == "__main__":
    key = jax.random.PRNGKey(0)
    k_x, k_w1, k_b1, k_w2, k_b2 = jax.random.split(key, 5)

    B = 256  # small batch (multiple of 128 -> no pad pass in the demo)
    x = jax.random.normal(k_x, (B, 3), dtype=jnp.float32)

    # Deterministic init mimicking nn.Linear's uniform(-1/sqrt(fan_in), 1/sqrt(fan_in)).
    lim1 = 1.0 / jnp.sqrt(3.0)
    w1 = jax.random.uniform(k_w1, (2, 3), minval=-lim1, maxval=lim1, dtype=jnp.float32)
    b1 = jax.random.uniform(k_b1, (2,), minval=-lim1, maxval=lim1, dtype=jnp.float32)
    lim2 = 1.0 / jnp.sqrt(2.0)
    w2 = jax.random.uniform(k_w2, (1, 2), minval=-lim2, maxval=lim2, dtype=jnp.float32)
    b2 = jax.random.uniform(k_b2, (1,), minval=-lim2, maxval=lim2, dtype=jnp.float32)

    out = mlp_forward(x, w1, b1, w2, b2)
    out = jax.block_until_ready(out)

    # Reference check in plain JAX (same math as the PyTorch module).
    ref = jnp.maximum(x @ w1.T + b1, 0.0) @ w2.T + b2
    assert out.shape == (B, 1)
    assert jnp.allclose(out, ref, atol=1e-5, rtol=1e-5)

    print("KERNEL_OK")
</pallas_src>

<mosaic_0001>
module attributes {stable_mosaic.version = 11 : i64} {
  func.func @mlp_kernel(%arg0: i32, %arg1: memref<11xf32, #tpu.memory_space<smem>>, %arg2: memref<3x2x128xf32, #tpu.memory_space<vmem>>, %arg3: memref<2x128xf32, #tpu.memory_space<vmem>>) attributes {dimension_semantics = [#tpu.dimension_semantics<parallel>], iteration_bounds = array<i64: 1>, scalar_prefetch = 0 : i64, scratch_operands = 0 : i64, tpu.core_type = #tpu.core_type<tc>, window_params = [{transform_indices = @transform_0, window_bounds = array<i64: 11>}, {transform_indices = @transform_1, window_bounds = array<i64: 3, 2, 128>}, {transform_indices = @transform_2, window_bounds = array<i64: 2, 128>}]} {
    %c0 = arith.constant 0 : index
    %c0_0 = arith.constant 0 : index
    %c0_1 = arith.constant 0 : index
    %0 = vector.load %arg2[%c0, %c0_0, %c0_1] : memref<3x2x128xf32, #tpu.memory_space<vmem>>, vector<1x2x128xf32>
    %1 = vector.shape_cast %0 : vector<1x2x128xf32> to vector<2x128xf32>
    %c1 = arith.constant 1 : index
    %c0_2 = arith.constant 0 : index
    %c0_3 = arith.constant 0 : index
    %2 = vector.load %arg2[%c1, %c0_2, %c0_3] : memref<3x2x128xf32, #tpu.memory_space<vmem>>, vector<1x2x128xf32>
    %3 = vector.shape_cast %2 : vector<1x2x128xf32> to vector<2x128xf32>
    %c2 = arith.constant 2 : index
    %c0_4 = arith.constant 0 : index
    %c0_5 = arith.constant 0 : index
    %4 = vector.load %arg2[%c2, %c0_4, %c0_5] : memref<3x2x128xf32, #tpu.memory_space<vmem>>, vector<1x2x128xf32>
    %5 = vector.shape_cast %4 : vector<1x2x128xf32> to vector<2x128xf32>
    %c0_6 = arith.constant 0 : index
    %6 = memref.load %arg1[%c0_6] : memref<11xf32, #tpu.memory_space<smem>>
    %c1_7 = arith.constant 1 : index
    %7 = memref.load %arg1[%c1_7] : memref<11xf32, #tpu.memory_space<smem>>
    %c2_8 = arith.constant 2 : index
    %8 = memref.load %arg1[%c2_8] : memref<11xf32, #tpu.memory_space<smem>>
    %c3 = arith.constant 3 : index
    %9 = memref.load %arg1[%c3] : memref<11xf32, #tpu.memory_space<smem>>
    %c4 = arith.constant 4 : index
    %10 = memref.load %arg1[%c4] : memref<11xf32, #tpu.memory_space<smem>>
    %c5 = arith.constant 5 : index
    %11 = memref.load %arg1[%c5] : memref<11xf32, #tpu.memory_space<smem>>
    %c6 = arith.constant 6 : index
    %12 = memref.load %arg1[%c6] : memref<11xf32, #tpu.memory_space<smem>>
    %c7 = arith.constant 7 : index
    %13 = memref.load %arg1[%c7] : memref<11xf32, #tpu.memory_space<smem>>
    %c8 = arith.constant 8 : index
    %14 = memref.load %arg1[%c8] : memref<11xf32, #tpu.memory_space<smem>>
    %c9 = arith.constant 9 : index
    %15 = memref.load %arg1[%c9] : memref<11xf32, #tpu.memory_space<smem>>
    %c10 = arith.constant 10 : index
    %16 = memref.load %arg1[%c10] : memref<11xf32, #tpu.memory_space<smem>>
    %17 = vector.broadcast %6 : f32 to vector<2x128xf32>
    %18 = arith.mulf %17, %1 : vector<2x128xf32>
    %19 = vector.broadcast %7 : f32 to vector<2x128xf32>
    %20 = arith.mulf %19, %3 : vector<2x128xf32>
    %21 = arith.addf %18, %20 : vector<2x128xf32>
    %22 = vector.broadcast %8 : f32 to vector<2x128xf32>
    %23 = arith.mulf %22, %5 : vector<2x128xf32>
    %24 = arith.addf %21, %23 : vector<2x128xf32>
    %25 = vector.broadcast %12 : f32 to vector<2x128xf32>
    %26 = arith.addf %24, %25 : vector<2x128xf32>
    %cst = arith.constant 0.000000e+00 : f32
    %27 = vector.broadcast %cst : f32 to vector<2x128xf32>
    %28 = arith.maximumf %26, %27 : vector<2x128xf32>
    %29 = vector.broadcast %9 : f32 to vector<2x128xf32>
    %30 = arith.mulf %29, %1 : vector<2x128xf32>
    %31 = vector.broadcast %10 : f32 to vector<2x128xf32>
    %32 = arith.mulf %31, %3 : vector<2x128xf32>
    %33 = arith.addf %30, %32 : vector<2x128xf32>
    %34 = vector.broadcast %11 : f32 to vector<2x128xf32>
    %35 = arith.mulf %34, %5 : vector<2x128xf32>
    %36 = arith.addf %33, %35 : vector<2x128xf32>
    %37 = vector.broadcast %13 : f32 to vector<2x128xf32>
    %38 = arith.addf %36, %37 : vector<2x128xf32>
    %cst_9 = arith.constant 0.000000e+00 : f32
    %39 = vector.broadcast %cst_9 : f32 to vector<2x128xf32>
    %40 = arith.maximumf %38, %39 : vector<2x128xf32>
    %41 = vector.broadcast %14 : f32 to vector<2x128xf32>
    %42 = arith.mulf %41, %28 : vector<2x128xf32>
    %43 = vector.broadcast %15 : f32 to vector<2x128xf32>
    %44 = arith.mulf %43, %40 : vector<2x128xf32>
    %45 = arith.addf %42, %44 : vector<2x128xf32>
    %46 = vector.broadcast %16 : f32 to vector<2x128xf32>
    %47 = arith.addf %45, %46 : vector<2x128xf32>
    %c0_10 = arith.constant 0 : index
    %c0_11 = arith.constant 0 : index
    %48 = vector.load %arg3[%c0_10, %c0_11] : memref<2x128xf32, #tpu.memory_space<vmem>>, vector<2x128xf32>
    tpu.vector_store %arg3[%c0_10, %c0_11], %47 {strides = array<i32>} : memref<2x128xf32, #tpu.memory_space<vmem>>, vector<2x128xf32>,
    return
  }
  func.func @transform_0(%arg0: i32) -> i32 {
    %c0_i32 = arith.constant 0 : i32
    %c0_i32_0 = arith.constant 0 : i32
    return %c0_i32 : i32
  }
  func.func @transform_1(%arg0: i32) -> (i32, i32, i32) {
    %c0_i32 = arith.constant 0 : i32
    %c0_i32_0 = arith.constant 0 : i32
    %c0_i32_1 = arith.constant 0 : i32
    return %c0_i32, %arg0, %c0_i32_0 : i32, i32, i32
  }
  func.func @transform_2(%arg0: i32) -> (i32, i32) {
    %c0_i32 = arith.constant 0 : i32
    %c0_i32_0 = arith.constant 0 : i32
    return %arg0, %c0_i32 : i32, i32
  }
}

</mosaic_0001>

<llo_original>
// kernel: tpu_custom_call.1
$region0: #{tpu_custom_call.1}
  #allocation0 [shape = 'u32[]', space=smem, size = 0x4, offset = 0x4, fixed_abs, tag = 'smem constant byte address 0x4 - core index']
  #allocation1 [shape = 'u32[144,128]{1,0:T(1,128)}', space=vmem, size = 0x12000, scoped, tag = 'internal scratch']
  %s0 = inlined_call_operand.hbm [shape: f32[11], index: 0, kind: input, shape index: {}]
  %s1 = inlined_call_operand.hbm [shape: f32[3,2,128], index: 1, kind: input, shape index: {}]
  %s2 = inlined_call_operand.hbm [shape: f32[2,128], index: 2, kind: output, shape index: {}]
  %s3 = sld [smem:[#allocation0]]
  $region26: #{tpu_custom_call.1} parent=0
    _
  %s5 = ssub.s32 1, %s3
  %s6 = scalar_select 0, %s5, %s3
  $region1: #{tpu_custom_call.1} parent=0
    #allocation2 [shape = 'u8[512]{0}', space=smem, size = 0x200, scoped, tag = 'input window, operand 0, single buffered']
    #allocation3 [shape = 's32[1]{0}', space=sflag, size = 0x4, scoped, tag = 'scoped memory for tpu_custom_call.1']
    #allocation4 [shape = 's32[1]{0}', space=sflag, size = 0x4, scoped, tag = 'scoped memory for tpu_custom_call.1']
    #allocation5 [shape = 's32[1]{0}', space=sflag, size = 0x4, scoped, tag = 'scoped memory for tpu_custom_call.1']
    #allocation6 [shape = 'u8[3072]{0}', space=vmem, size = 0xc00, scoped, tag = 'input window, operand 1, single buffered']
    #allocation7 [shape = 'u8[1024]{0}', space=vmem, size = 0x400, scoped, tag = 'output window, operand 0, single buffered']
    %7 = vsyncpa [#allocation5], 0
    %8 = vsyncpa [#allocation3], 0
    %9 = vsyncpa [#allocation4], 0
    // Predicated region
    $region2: #{tpu_custom_call.1} parent=1 // pred_check
      _
    $region3: #{tpu_custom_call.1} parent=1 // pred_check_branch
      %11 = sbr.rel (0) target = $region5
    $region4: #{tpu_custom_call.1} parent=1 // pred_region
      %s13 = ssub.s32 16, 16
      %14 = vsyncadd [#allocation5], %s13
      %17 = dma.hbm_to_smem %s0, 16, [#allocation2], [#allocation5]
    $region5: #{tpu_custom_call.1} parent=1 // pred_fallthru
      _
    // Predicated region
    $region6: #{tpu_custom_call.1} parent=1 // pred_check
      _
    $region7: #{tpu_custom_call.1} parent=1 // pred_check_branch
      %19 = sbr.rel (0) target = $region9
    $region8: #{tpu_custom_call.1} parent=1 // pred_region
      %s21 = ssub.s32 96, 96
      %22 = vsyncadd [#allocation3], %s21
      %s23 = sshll.u32 [#allocation6], 4
      %s24 = int_to_ptr.vmem [resolvable:$true] %s23
      %29 = dma.hbm_to_vmem [thread:$0]  %s1, 96, %s24, [#allocation3], 32, 32, 2
    $region9: #{tpu_custom_call.1} parent=1 // pred_fallthru
      _
    // Predicated region
    $region10: #{tpu_custom_call.1} parent=1 // pred_check
      _
    $region11: #{tpu_custom_call.1} parent=1 // pred_check_branch
      %31 = sbr.rel (0) target = $region13
    $region12: #{tpu_custom_call.1} parent=1 // pred_region
      %32 = dma.done [#allocation5], 16
    $region13: #{tpu_custom_call.1} parent=1 // pred_fallthru
      _
    // Predicated region
    $region14: #{tpu_custom_call.1} parent=1 // pred_check
      _
    $region15: #{tpu_custom_call.1} parent=1 // pred_check_branch
      %34 = sbr.rel (0) target = $region17
    $region16: #{tpu_custom_call.1} parent=1 // pred_region
      %35 = dma.done [#allocation3], 96
    $region17: #{tpu_custom_call.1} parent=1 // pred_fallthru
      _
    %36 = sfence
    %v37 = vld [vmem:[#allocation6] sm:$0x3]
    %s38 = scalar_lea.vmem [#allocation6], 2
    %v39 = vld [vmem:[%s38] sm:$0x3]
    %s40 = scalar_lea.vmem [#allocation6], 4
    %v41 = vld [vmem:[%s40] sm:$0x3]
    %s42 = sld [smem:[#allocation2]]
    %s43 = sld [smem:[#allocation2 + $0x1]]
    %s44 = sld [smem:[#allocation2 + $0x2]]
    %s45 = sld [smem:[#allocation2 + $0x3]]
    %s46 = sld [smem:[#allocation2 + $0x4]]
    %s47 = sld [smem:[#allocation2 + $0x5]]
    %s48 = sld [smem:[#allocation2 + $0x6]]
    %s49 = sld [smem:[#allocation2 + $0x7]]
    %s50 = sld [smem:[#allocation2 + $0x8]]
    %s51 = sld [smem:[#allocation2 + $0x9]]
    %s52 = sld [smem:[#allocation2 + $0xa]]
    %v53 = vstv %s42
    %v54 = vmul.f32 %v53, %v37
    %v55 = vstv %s43
    %v56 = vmul.f32 %v55, %v39
    %v57 = vadd.f32 %v54, %v56
    %v58 = vstv %s44
    %v59 = vmul.f32 %v58, %v41
    %v60 = vadd.f32 %v57, %v59
    %v61 = vstv %s48
    %v62 = vadd.f32 %v60, %v61
    %v63 = vmax.f32 %v62, 0.0
    %v64 = vstv %s45
    %v65 = vmul.f32 %v64, %v37
    %v66 = vstv %s46
    %v67 = vmul.f32 %v66, %v39
    %v68 = vadd.f32 %v65, %v67
    %v69 = vstv %s47
    %v70 = vmul.f32 %v69, %v41
    %v71 = vadd.f32 %v68, %v70
    %v72 = vstv %s49
    %v73 = vadd.f32 %v71, %v72
    %v74 = vmax.f32 %v73, 0.0
    %v75 = vstv %s50
    %v76 = vmul.f32 %v75, %v63
    %v77 = vstv %s51
    %v78 = vmul.f32 %v77, %v74
    %v79 = vadd.f32 %v76, %v78
    %v80 = vstv %s52
    %v81 = vadd.f32 %v79, %v80
    %82 = vst [vmem:[#allocation7] sm:$0x3] %v81
    // Predicated region
    $region18: #{tpu_custom_call.1} parent=1 // pred_check
      _
    $region19: #{tpu_custom_call.1} parent=1 // pred_check_branch
      %84 = sbr.rel (0) target = $region21
    $region20: #{tpu_custom_call.1} parent=1 // pred_region
      %s86 = ssub.s32 32, 32
      %87 = vsyncadd [#allocation4], %s86
      %s89 = sshll.u32 [#allocation7], 4
      %s90 = int_to_ptr.vmem [resolvable:$true] %s89
      %92 = dma.vmem_to_hbm [thread:$0]  %s90, 32, %s2, [#allocation4]
    $region21: #{tpu_custom_call.1} parent=1 // pred_fallthru
      _
    // Predicated region
    $region22: #{tpu_custom_call.1} parent=1 // pred_check
      _
    $region23: #{tpu_custom_call.1} parent=1 // pred_check_branch
      %94 = sbr.rel (0) target = $region25
    $region24: #{tpu_custom_call.1} parent=1 // pred_region
      %95 = dma.done [#allocation4], 32
    $region25: #{tpu_custom_call.1} parent=1 // pred_fallthru
      _
    %96 = vsyncpa [#allocation3], 1
    %97 = vsyncpa [#allocation4], 1
    %98 = vsyncpa [#allocation5], 1

</llo_original>
